<compile_context>
chip_gen: v7x
topology: tpu7x:2x2x1
jax: 0.10.0
libtpu: 0.0.40
codegen_flags: <defaults>
</compile_context>

<pallas_src>
import math
import jax
import jax.numpy as jnp
from jax import lax
from jax.experimental import pallas as pl
from jax.experimental.pallas import tpu as pltpu


def varlayer_kernel(x_ref, w_ref, b_ref, eps_ref,
                    z_ref, mu_ref, logvar_ref, kl_ref):
    L = mu_ref.shape[-1]

    # Fused encoder: one MXU pass producing [mu | log_var] (lane width 2L).
    y = jnp.dot(x_ref[...], w_ref[...],
                preferred_element_type=jnp.float32) + b_ref[...]
    mu = y[:, :L]
    log_var = y[:, L:]

    eps = eps_ref[...]
    std = jnp.exp(0.5 * log_var)
    z = mu + std * eps

    # Monte-Carlo KL term per element:
    #   log q(z|mu,std) - log p(z)
    #     = -log(std) - (z-mu)^2/(2*std^2) + 0.5*z^2     (0.5*log(2pi) cancels)
    #     = 0.5 * (z^2 - log_var - eps^2)
    kl_elem = 0.5 * (z * z - log_var - eps * eps)

    # Lane-dense per-sample KL: reduce over the latent dim with a tiny MXU
    # contraction so the (1, batch_tile) result lands with batch on the lane
    # axis -> unmasked full-width store instead of a masked 1-lane store.
    ones_row = jnp.ones((1, L), dtype=jnp.float32)
    kl_row = lax.dot_general(ones_row, kl_elem,
                             dimension_numbers=(((1,), (1,)), ((), ())),
                             preferred_element_type=jnp.float32)  # (1, bt)

    z_ref[...] = z
    mu_ref[...] = mu
    logvar_ref[...] = log_var
    kl_ref[...] = kl_row


def _pick_batch_tile(n):
    # Large tiles amortize per-step overhead; multiples of 128 keep the
    # (1, batch_tile) KL store lane-dense and satisfy the (8,128) rule;
    # keep >= 2 grid steps so v7x's two TensorCores both get work.
    for cand in (1024, 512, 256, 128):
        if n % cand == 0 and n // cand >= 2:
            return cand
    return n  # single tile: block == full array is always legal


def varlayer_forward(x, w_mu, b_mu, w_var, b_var, eps, *, batch_tile=None):
    """x: [N, D_in] f32; weights [D_in, L]; biases [1, L]; eps: [N, L].

    Returns (z, (mu, log_var), kl) exactly like VarLayer.forward (kl is the
    single-sample Monte-Carlo estimate log q(z|x) - log p(z), per sample).
    """
    N, D_in = x.shape
    L = w_mu.shape[1]

    if batch_tile is None:
        batch_tile = _pick_batch_tile(N)
    assert N % batch_tile == 0, "N must be divisible by batch_tile"
    grid = (N // batch_tile,)

    # Fuse the two Linear layers into a single [D_in, 2L] weight / [1, 2L] bias.
    w = jnp.concatenate([w_mu, w_var], axis=1)
    b = jnp.concatenate([b_mu, b_var], axis=1)

    bt = batch_tile
    f32 = 4
    # Double-buffered working set estimate (weights + x/eps tiles + 4 outputs).
    vmem_needed = f32 * 2 * (D_in * 2 * L + 2 * L        # fused weight + bias
                             + bt * D_in + bt * L        # x, eps tiles
                             + 3 * bt * L + bt)          # z, mu, log_var, kl
    vmem_limit = int(min(max(32 * 1024 * 1024, 2 * vmem_needed),
                         48 * 1024 * 1024))              # stay under v7x 64 MiB

    out_shapes = (
        jax.ShapeDtypeStruct((N, L), jnp.float32),   # z
        jax.ShapeDtypeStruct((N, L), jnp.float32),   # mu
        jax.ShapeDtypeStruct((N, L), jnp.float32),   # log_var
        jax.ShapeDtypeStruct((1, N), jnp.float32),   # kl (batch on lane axis)
    )

    x_spec = pl.BlockSpec((bt, D_in), lambda i: (i, 0))
    w_spec = pl.BlockSpec((D_in, 2 * L), lambda i: (0, 0))
    b_spec = pl.BlockSpec((1, 2 * L), lambda i: (0, 0))
    eps_spec = pl.BlockSpec((bt, L), lambda i: (i, 0))
    lat_out_spec = pl.BlockSpec((bt, L), lambda i: (i, 0))
    kl_out_spec = pl.BlockSpec((1, bt), lambda i: (0, i))

    z, mu, log_var, kl = pl.pallas_call(
        varlayer_kernel,
        out_shape=out_shapes,
        grid_spec=pltpu.PrefetchScalarGridSpec(
            num_scalar_prefetch=0,
            grid=grid,
            in_specs=[x_spec, w_spec, b_spec, eps_spec],
            out_specs=(lat_out_spec, lat_out_spec, lat_out_spec, kl_out_spec),
        ),
        compiler_params=pltpu.CompilerParams(
            dimension_semantics=("parallel",),
            vmem_limit_bytes=vmem_limit),
    )(x, w, b, eps)

    return z, (mu, log_var), kl[0]


def _reference(x, w_mu, b_mu, w_var, b_var, eps):
    # Unsimplified formula, matching the PyTorch source literally.
    mu = x @ w_mu + b_mu
    log_var = x @ w_var + b_var
    std = jnp.exp(0.5 * log_var)
    z = mu + std * eps
    log_qzx = (-jnp.log(std) - 0.5 * math.log(2 * math.pi)
               - (z - mu) ** 2 / (2 * std ** 2))
    log_pz = -0.5 * math.log(2 * math.pi) - 0.5 * z ** 2
    kl = jnp.sum(log_qzx - log_pz, axis=-1)
    return z, (mu, log_var), kl


if __name__ == "__main__":
    # Small but multi-tile: N=256 -> batch_tile=128, grid=(2,).
    N, INPUT_DIM, LATENT_DIM = 256, 32, 16

    key = jax.random.PRNGKey(0)
    kx, kwm, kbm, kwv, kbv, keps = jax.random.split(key, 6)

    # Deterministic parameter init (mimicking nn.Linear's uniform fan-in init).
    bound = 1.0 / math.sqrt(INPUT_DIM)
    w_mu = jax.random.uniform(kwm, (INPUT_DIM, LATENT_DIM), jnp.float32, -bound, bound)
    b_mu = jax.random.uniform(kbm, (1, LATENT_DIM), jnp.float32, -bound, bound)
    w_var = jax.random.uniform(kwv, (INPUT_DIM, LATENT_DIM), jnp.float32, -bound, bound)
    b_var = jax.random.uniform(kbv, (1, LATENT_DIM), jnp.float32, -bound, bound)

    x = jax.random.normal(kx, (N, INPUT_DIM), jnp.float32)
    # rsample noise (the stochastic part of Normal.rsample), generated in glue
    # so the kernel is bit-reproducible w.r.t. the reference.
    eps = jax.random.normal(keps, (N, LATENT_DIM), jnp.float32)

    z, (mu, log_var), kl = varlayer_forward(x, w_mu, b_mu, w_var, b_var, eps)
    jax.block_until_ready((z, mu, log_var, kl))

    z_r, (mu_r, lv_r), kl_r = _reference(x, w_mu, b_mu, w_var, b_var, eps)
    assert z.shape == (N, LATENT_DIM) and kl.shape == (N,)
    assert jnp.allclose(z, z_r, atol=1e-5)
    assert jnp.allclose(mu, mu_r, atol=1e-5)
    assert jnp.allclose(log_var, lv_r, atol=1e-5)
    # KL uses the algebraically simplified (more robust) form -> slightly
    # different rounding than the subtract-and-divide reference.
    assert jnp.allclose(kl, kl_r, atol=1e-4, rtol=1e-4)

    print("KERNEL_OK")
</pallas_src>

<mosaic_0001>
module attributes {stable_mosaic.version = 11 : i64} {
  func.func @varlayer_kernel(%arg0: i32, %arg1: memref<128x32xf32, #tpu.memory_space<vmem>>, %arg2: memref<32x32xf32, #tpu.memory_space<vmem>>, %arg3: memref<1x32xf32, #tpu.memory_space<vmem>>, %arg4: memref<128x16xf32, #tpu.memory_space<vmem>>, %arg5: memref<128x16xf32, #tpu.memory_space<vmem>>, %arg6: memref<128x16xf32, #tpu.memory_space<vmem>>, %arg7: memref<128x16xf32, #tpu.memory_space<vmem>>, %arg8: memref<1x128xf32, #tpu.memory_space<vmem>>) attributes {dimension_semantics = [#tpu.dimension_semantics<parallel>], iteration_bounds = array<i64: 2>, scalar_prefetch = 0 : i64, scratch_operands = 0 : i64, tpu.core_type = #tpu.core_type<tc>, window_params = [{transform_indices = @transform_0, window_bounds = array<i64: 128, 32>}, {pipeline_mode = #tpu.pipeline_mode<synchronous>, transform_indices = @transform_1, window_bounds = array<i64: 32, 32>}, {pipeline_mode = #tpu.pipeline_mode<synchronous>, transform_indices = @transform_2, window_bounds = array<i64: 1, 32>}, {transform_indices = @transform_3, window_bounds = array<i64: 128, 16>}, {transform_indices = @transform_4, window_bounds = array<i64: 128, 16>}, {transform_indices = @transform_5, window_bounds = array<i64: 128, 16>}, {transform_indices = @transform_6, window_bounds = array<i64: 128, 16>}, {transform_indices = @transform_7, window_bounds = array<i64: 1, 128>}]} {
    %c0 = arith.constant 0 : index
    %c0_0 = arith.constant 0 : index
    %0 = vector.load %arg1[%c0, %c0_0] : memref<128x32xf32, #tpu.memory_space<vmem>>, vector<128x32xf32>
    %c0_1 = arith.constant 0 : index
    %c0_2 = arith.constant 0 : index
    %1 = vector.load %arg2[%c0_1, %c0_2] : memref<32x32xf32, #tpu.memory_space<vmem>>, vector<32x32xf32>
    %cst = arith.constant dense<0.000000e+00> : vector<128x32xf32>
    %2 = tpu.matmul %0, %1, %cst {dimension_numbers = #tpu.dot_dimension_numbers<[1], [0], [0], [1], [0, 0, 1, 1], [], []>} : vector<128x32xf32>, vector<32x32xf32>, vector<128x32xf32> -> vector<128x32xf32>
    %c0_3 = arith.constant 0 : index
    %c0_4 = arith.constant 0 : index
    %3 = vector.load %arg3[%c0_3, %c0_4] : memref<1x32xf32, #tpu.memory_space<vmem>>, vector<1x32xf32>
    %4 = vector.broadcast %3 : vector<1x32xf32> to vector<128x32xf32>
    %5 = arith.addf %2, %4 : vector<128x32xf32>
    %6 = vector.extract_strided_slice %5 {offsets = [0, 0], sizes = [128, 16], strides = [1, 1]} : vector<128x32xf32> to vector<128x16xf32>
    %7 = vector.extract_strided_slice %5 {offsets = [0, 16], sizes = [128, 16], strides = [1, 1]} : vector<128x32xf32> to vector<128x16xf32>
    %c0_5 = arith.constant 0 : index
    %c0_6 = arith.constant 0 : index
    %8 = vector.load %arg4[%c0_5, %c0_6] : memref<128x16xf32, #tpu.memory_space<vmem>>, vector<128x16xf32>
    %cst_7 = arith.constant 5.000000e-01 : f32
    %9 = vector.broadcast %cst_7 : f32 to vector<128x16xf32>
    %10 = arith.mulf %9, %7 : vector<128x16xf32>
    %11 = math.exp %10 : vector<128x16xf32>
    %12 = arith.mulf %11, %8 : vector<128x16xf32>
    %13 = arith.addf %6, %12 : vector<128x16xf32>
    %14 = arith.mulf %13, %13 : vector<128x16xf32>
    %15 = arith.subf %14, %7 : vector<128x16xf32>
    %16 = arith.mulf %8, %8 : vector<128x16xf32>
    %17 = arith.subf %15, %16 : vector<128x16xf32>
    %cst_8 = arith.constant 5.000000e-01 : f32
    %18 = vector.broadcast %cst_8 : f32 to vector<128x16xf32>
    %19 = arith.mulf %18, %17 : vector<128x16xf32>
    %cst_9 = arith.constant 1.000000e+00 : f32
    %20 = vector.broadcast %cst_9 : f32 to vector<1x16xf32>
    %cst_10 = arith.constant dense<0.000000e+00> : vector<1x128xf32>
    %21 = tpu.matmul %20, %19, %cst_10 {dimension_numbers = #tpu.dot_dimension_numbers<[1], [1], [0], [0], [0, 0, 1, 0], [], []>} : vector<1x16xf32>, vector<128x16xf32>, vector<1x128xf32> -> vector<1x128xf32>
    %c0_11 = arith.constant 0 : index
    %c0_12 = arith.constant 0 : index
    %22 = vector.load %arg5[%c0_11, %c0_12] : memref<128x16xf32, #tpu.memory_space<vmem>>, vector<128x16xf32>
    tpu.vector_store %arg5[%c0_11, %c0_12], %13 {strides = array<i32>} : memref<128x16xf32, #tpu.memory_space<vmem>>, vector<128x16xf32>,
    %c0_13 = arith.constant 0 : index
    %c0_14 = arith.constant 0 : index
    %23 = vector.load %arg6[%c0_13, %c0_14] : memref<128x16xf32, #tpu.memory_space<vmem>>, vector<128x16xf32>
    tpu.vector_store %arg6[%c0_13, %c0_14], %6 {strides = array<i32>} : memref<128x16xf32, #tpu.memory_space<vmem>>, vector<128x16xf32>,
    %c0_15 = arith.constant 0 : index
    %c0_16 = arith.constant 0 : index
    %24 = vector.load %arg7[%c0_15, %c0_16] : memref<128x16xf32, #tpu.memory_space<vmem>>, vector<128x16xf32>
    tpu.vector_store %arg7[%c0_15, %c0_16], %7 {strides = array<i32>} : memref<128x16xf32, #tpu.memory_space<vmem>>, vector<128x16xf32>,
    %c0_17 = arith.constant 0 : index
    %c0_18 = arith.constant 0 : index
    %25 = vector.load %arg8[%c0_17, %c0_18] : memref<1x128xf32, #tpu.memory_space<vmem>>, vector<1x128xf32>
    tpu.vector_store %arg8[%c0_17, %c0_18], %21 {strides = array<i32>} : memref<1x128xf32, #tpu.memory_space<vmem>>, vector<1x128xf32>,
    return
  }
  func.func @transform_0(%arg0: i32) -> (i32, i32) {
    %c0_i32 = arith.constant 0 : i32
    %c0_i32_0 = arith.constant 0 : i32
    return %arg0, %c0_i32 : i32, i32
  }
  func.func @transform_1(%arg0: i32) -> (i32, i32) {
    %c0_i32 = arith.constant 0 : i32
    %c0_i32_0 = arith.constant 0 : i32
    %c0_i32_1 = arith.constant 0 : i32
    return %c0_i32, %c0_i32_0 : i32, i32
  }
  func.func @transform_2(%arg0: i32) -> (i32, i32) {
    %c0_i32 = arith.constant 0 : i32
    %c0_i32_0 = arith.constant 0 : i32
    %c0_i32_1 = arith.constant 0 : i32
    return %c0_i32, %c0_i32_0 : i32, i32
  }
  func.func @transform_3(%arg0: i32) -> (i32, i32) {
    %c0_i32 = arith.constant 0 : i32
    %c0_i32_0 = arith.constant 0 : i32
    return %arg0, %c0_i32 : i32, i32
  }
  func.func @transform_4(%arg0: i32) -> (i32, i32) {
    %c0_i32 = arith.constant 0 : i32
    %c0_i32_0 = arith.constant 0 : i32
    return %arg0, %c0_i32 : i32, i32
  }
  func.func @transform_5(%arg0: i32) -> (i32, i32) {
    %c0_i32 = arith.constant 0 : i32
    %c0_i32_0 = arith.constant 0 : i32
    return %arg0, %c0_i32 : i32, i32
  }
  func.func @transform_6(%arg0: i32) -> (i32, i32) {
    %c0_i32 = arith.constant 0 : i32
    %c0_i32_0 = arith.constant 0 : i32
    return %arg0, %c0_i32 : i32, i32
  }
  func.func @transform_7(%arg0: i32) -> (i32, i32) {
    %c0_i32 = arith.constant 0 : i32
    %c0_i32_0 = arith.constant 0 : i32
    return %c0_i32, %arg0 : i32, i32
  }
}

</mosaic_0001>

<llo_original>
// kernel: tpu_custom_call.1
$region0: #{tpu_custom_call.1}
  #allocation0 [shape = 'u32[]', space=smem, size = 0x4, offset = 0x4, fixed_abs, tag = 'smem constant byte address 0x4 - core index']
  #allocation1 [shape = 'u32[144,128]{1,0:T(1,128)}', space=vmem, size = 0x12000, scoped, tag = 'internal scratch']
  %s0 = inlined_call_operand.vmem [shape: f32[256,32], index: 0, kind: input, shape index: {}]
  %s1 = inlined_call_operand.vmem [shape: f32[32,32], index: 1, kind: input, shape index: {}]
  %s2 = inlined_call_operand.vmem [shape: f32[1,32], index: 2, kind: input, shape index: {}]
  %s3 = inlined_call_operand.vmem [shape: f32[256,16], index: 3, kind: input, shape index: {}]
  %s4 = inlined_call_operand.vmem [shape: f32[256,16], index: 4, kind: output, shape index: {0}]
  %s5 = inlined_call_operand.vmem [shape: f32[256,16], index: 5, kind: output, shape index: {1}]
  %s6 = inlined_call_operand.vmem [shape: f32[256,16], index: 6, kind: output, shape index: {2}]
  %s7 = inlined_call_operand.hbm [shape: f32[1,256], index: 7, kind: output, shape index: {3}]
  %8 = xla_tuple %s4, %s5, %s6, %s7
  %s9 = sld [smem:[#allocation0]]
  $region73: #{tpu_custom_call.1} parent=0
    _
  %s11 = ssub.s32 1, %s9
  %s12 = scalar_select 0, %s11, %s9
  $region1: #{tpu_custom_call.1} parent=0
    #allocation2 [shape = 'u8[1024]{0}', space=vmem, size = 0x400, scoped, tag = 'output window, operand 3']
    #allocation3 [shape = 's32[2]{0}', space=sflag, size = 0x8, scoped, tag = 'scoped memory for tpu_custom_call.1']
    %13 = vsyncpa [#allocation3], 0
    %s14 = scalar_lea.sflag [#allocation3], 1
    %15 = vsyncpa %s14, 0
    loop: start=0, step=1, limit=4
    $region2: #{tpu_custom_call.1} parent=1 // loop_pre_header
      _
    $region3: #{tpu_custom_call.1} parent=1 // loop_header
      %s17 = sphi 0, %s21
      %p18 = scmp.ge.s32.totalorder %s17, 4
      %s27 = sphi 0, %s29
      %s30 = sphi 0, %s27
      %s31 = sphi 0, %s30
      %s47 = sphi 0, %s31
      %s51 = sphi 0, %s51
      %s53 = sphi 0, %s51
      %s54 = sphi 0, %s53
      %s68 = sphi 0, %s54
      %s72 = sphi 0, %s72
      %s74 = sphi 0, %s72
      %s75 = sphi 0, %s74
      %s89 = sphi 0, %s75
      %s95 = sphi 0, %s97
      %s98 = sphi 0, %s95
      %s99 = sphi 0, %s98
      %s115 = sphi 0, %s99
      %s121 = sphi 0, %s123
      %s124 = sphi 0, %s121
      %s125 = sphi 0, %s124
      %s141 = sphi 0, %s125
      %s147 = sphi 0, %s149
      %s150 = sphi 0, %s147
      %s151 = sphi 0, %s150
      %s167 = sphi 0, %s151
      %s173 = sphi 0, %s175
      %s176 = sphi 0, %s173
      %s177 = sphi 0, %s176
      %s193 = sphi 0, %s177
      %s199 = sphi 0, %s201
      %s202 = sphi 0, %s199
      %s203 = sphi 0, %s202
      %s219 = sphi 0, %s203
    $region4: #{tpu_custom_call.1} parent=1 // loop_header_branch
      %20 = sbr.rel (%p18) target = $region8
    $region5: #{tpu_custom_call.1} parent=1 // loop_body
      %s22 = ssub.s32 %s17, 1
      %s23 = ssub.s32 %s17, 2
      %s24 = sadd.s32 %s17, 1
      %s25 = ssub.s32 %s17, %s24
      %p26 = scmp.eq.s32.totalorder %s25, 0
      %s28 = sadd.s32 %s27, 1
      %s29 = scalar_select %p26, %s27, %s28
      %p32 = pneg %p26
      %p33 = scmp.eq.s32.totalorder %s17, 1
      %p34 = por %p32, %p33
      %p35 = scmp.ne.s32.totalorder %s27, %s30
      %p36 = scmp.eq.s32.totalorder %s17, 0
      %p37 = por %p35, %p36
      %p38 = scmp.ne.s32.totalorder %s27, %s30
      %p39 = scmp.eq.s32.totalorder %s22, 1
      %p40 = por %p38, %p39
      %p41 = scmp.ne.s32.totalorder %s30, %s31
      %p42 = scmp.eq.s32.totalorder %s22, 0
      %p43 = por %p41, %p42
      %p44 = scmp.ne.s32.totalorder %s30, %s31
      %p45 = scmp.eq.s32.totalorder %s23, 1
      %p46 = por %p44, %p45
      %p48 = scmp.ne.s32.totalorder %s31, %s47
      %p49 = scmp.eq.s32.totalorder %s23, 0
      %p50 = por %p48, %p49
      %s52 = sadd.s32 %s51, 1
      %p55 = scmp.eq.s32.totalorder %s17, 1
      %p56 = scmp.ne.s32.totalorder %s51, %s53
      %p57 = scmp.eq.s32.totalorder %s17, 0
      %p58 = por %p56, %p57
      %p59 = scmp.ne.s32.totalorder %s51, %s53
      %p60 = scmp.eq.s32.totalorder %s22, 1
      %p61 = por %p59, %p60
      %p62 = scmp.ne.s32.totalorder %s53, %s54
      %p63 = scmp.eq.s32.totalorder %s22, 0
      %p64 = por %p62, %p63
      %p65 = scmp.ne.s32.totalorder %s53, %s54
      %p66 = scmp.eq.s32.totalorder %s23, 1
      %p67 = por %p65, %p66
      %p69 = scmp.ne.s32.totalorder %s54, %s68
      %p70 = scmp.eq.s32.totalorder %s23, 0
      %p71 = por %p69, %p70
      %s73 = sadd.s32 %s72, 1
      %p76 = scmp.eq.s32.totalorder %s17, 1
      %p77 = scmp.ne.s32.totalorder %s72, %s74
      %p78 = scmp.eq.s32.totalorder %s17, 0
      %p79 = por %p77, %p78
      %p80 = scmp.ne.s32.totalorder %s72, %s74
      %p81 = scmp.eq.s32.totalorder %s22, 1
      %p82 = por %p80, %p81
      %p83 = scmp.ne.s32.totalorder %s74, %s75
      %p84 = scmp.eq.s32.totalorder %s22, 0
      %p85 = por %p83, %p84
      %p86 = scmp.ne.s32.totalorder %s74, %s75
      %p87 = scmp.eq.s32.totalorder %s23, 1
      %p88 = por %p86, %p87
      %p90 = scmp.ne.s32.totalorder %s75, %s89
      %p91 = scmp.eq.s32.totalorder %s23, 0
      %p92 = por %p90, %p91
      %s93 = ssub.s32 %s17, %s24
      %p94 = scmp.eq.s32.totalorder %s93, 0
      %s96 = sadd.s32 %s95, 1
      %s97 = scalar_select %p94, %s95, %s96
      %p100 = pneg %p94
      %p101 = scmp.eq.s32.totalorder %s17, 1
      %p102 = por %p100, %p101
      %p103 = scmp.ne.s32.totalorder %s95, %s98
      %p104 = scmp.eq.s32.totalorder %s17, 0
      %p105 = por %p103, %p104
      %p106 = scmp.ne.s32.totalorder %s95, %s98
      %p107 = scmp.eq.s32.totalorder %s22, 1
      %p108 = por %p106, %p107
      %p109 = scmp.ne.s32.totalorder %s98, %s99
      %p110 = scmp.eq.s32.totalorder %s22, 0
      %p111 = por %p109, %p110
      %p112 = scmp.ne.s32.totalorder %s98, %s99
      %p113 = scmp.eq.s32.totalorder %s23, 1
      %p114 = por %p112, %p113
      %p116 = scmp.ne.s32.totalorder %s99, %s115
      %p117 = scmp.eq.s32.totalorder %s23, 0
      %p118 = por %p116, %p117
      %s119 = ssub.s32 %s17, %s24
      %p120 = scmp.eq.s32.totalorder %s119, 0
      %s122 = sadd.s32 %s121, 1
      %s123 = scalar_select %p120, %s121, %s122
      %p126 = pneg %p120
      %p127 = scmp.eq.s32.totalorder %s17, 1
      %p128 = por %p126, %p127
      %p129 = scmp.ne.s32.totalorder %s121, %s124
      %p130 = scmp.eq.s32.totalorder %s17, 0
      %p131 = por %p129, %p130
      %p132 = scmp.ne.s32.totalorder %s121, %s124
      %p133 = scmp.eq.s32.totalorder %s22, 1
      %p134 = por %p132, %p133
      %p135 = scmp.ne.s32.totalorder %s124, %s125
      %p136 = scmp.eq.s32.totalorder %s22, 0
      %p137 = por %p135, %p136
      %p138 = scmp.ne.s32.totalorder %s124, %s125
      %p139 = scmp.eq.s32.totalorder %s23, 1
      %p140 = por %p138, %p139
      %p142 = scmp.ne.s32.totalorder %s125, %s141
      %p143 = scmp.eq.s32.totalorder %s23, 0
      %p144 = por %p142, %p143
      %s145 = ssub.s32 %s17, %s24
      %p146 = scmp.eq.s32.totalorder %s145, 0
      %s148 = sadd.s32 %s147, 1
      %s149 = scalar_select %p146, %s147, %s148
      %p152 = pneg %p146
      %p153 = scmp.eq.s32.totalorder %s17, 1
      %p154 = por %p152, %p153
      %p155 = scmp.ne.s32.totalorder %s147, %s150
      %p156 = scmp.eq.s32.totalorder %s17, 0
      %p157 = por %p155, %p156
      %p158 = scmp.ne.s32.totalorder %s147, %s150
      %p159 = scmp.eq.s32.totalorder %s22, 1
      %p160 = por %p158, %p159
      %p161 = scmp.ne.s32.totalorder %s150, %s151
      %p162 = scmp.eq.s32.totalorder %s22, 0
      %p163 = por %p161, %p162
      %p164 = scmp.ne.s32.totalorder %s150, %s151
      %p165 = scmp.eq.s32.totalorder %s23, 1
      %p166 = por %p164, %p165
      %p168 = scmp.ne.s32.totalorder %s151, %s167
      %p169 = scmp.eq.s32.totalorder %s23, 0
      %p170 = por %p168, %p169
      %s171 = ssub.s32 %s17, %s24
      %p172 = scmp.eq.s32.totalorder %s171, 0
      %s174 = sadd.s32 %s173, 1
      %s175 = scalar_select %p172, %s173, %s174
      %p178 = pneg %p172
      %p179 = scmp.eq.s32.totalorder %s17, 1
      %p180 = por %p178, %p179
      %p181 = scmp.ne.s32.totalorder %s173, %s176
      %p182 = scmp.eq.s32.totalorder %s17, 0
      %p183 = por %p181, %p182
      %p184 = scmp.ne.s32.totalorder %s173, %s176
      %p185 = scmp.eq.s32.totalorder %s22, 1
      %p186 = por %p184, %p185
      %p187 = scmp.ne.s32.totalorder %s176, %s177
      %p188 = scmp.eq.s32.totalorder %s22, 0
      %p189 = por %p187, %p188
      %p190 = scmp.ne.s32.totalorder %s176, %s177
      %p191 = scmp.eq.s32.totalorder %s23, 1
      %p192 = por %p190, %p191
      %p194 = scmp.ne.s32.totalorder %s177, %s193
      %p195 = scmp.eq.s32.totalorder %s23, 0
      %p196 = por %p194, %p195
      %s197 = ssub.s32 %s17, %s24
      %p198 = scmp.eq.s32.totalorder %s197, 0
      %s200 = sadd.s32 %s199, 1
      %s201 = scalar_select %p198, %s199, %s200
      %p204 = pneg %p198
      %p205 = scmp.eq.s32.totalorder %s17, 1
      %p206 = por %p204, %p205
      %p207 = scmp.ne.s32.totalorder %s199, %s202
      %p208 = scmp.eq.s32.totalorder %s17, 0
      %p209 = por %p207, %p208
      %p210 = scmp.ne.s32.totalorder %s199, %s202
      %p211 = scmp.eq.s32.totalorder %s22, 1
      %p212 = por %p210, %p211
      %p213 = scmp.ne.s32.totalorder %s202, %s203
      %p214 = scmp.eq.s32.totalorder %s22, 0
      %p215 = por %p213, %p214
      %p216 = scmp.ne.s32.totalorder %s202, %s203
      %p217 = scmp.eq.s32.totalorder %s23, 1
      %p218 = por %p216, %p217
      %p220 = scmp.ne.s32.totalorder %s203, %s219
      %p221 = scmp.eq.s32.totalorder %s23, 0
      %p222 = por %p220, %p221
      %p223 = scmp.le.s32.totalorder 1, %s17
      %p224 = scmp.lt.s32.totalorder %s17, 3
      %p225 = pnand %p223, %p224
      %p226 = pneg %p225
      // Predicated region
      $region9: #{tpu_custom_call.1} parent=5 // pred_check
        _
      $region10: #{tpu_custom_call.1} parent=5 // pred_check_branch
        %228 = sbr.rel (%p225) target = $region12
      $region11: #{tpu_custom_call.1} parent=5 // pred_region
        %s229 = ssub.s32 %s17, 1
        // Predicated region
        $region13: #{tpu_custom_call.1} parent=11 // pred_check
          %p230 = pneg %p64
        $region14: #{tpu_custom_call.1} parent=11 // pred_check_branch
          %232 = sbr.rel (%p230) target = $region16
        $region15: #{tpu_custom_call.1} parent=11 // pred_region
          _
        $region16: #{tpu_custom_call.1} parent=11 // pred_fallthru
          _
        // Predicated region
        $region17: #{tpu_custom_call.1} parent=11 // pred_check
          %p233 = pneg %p85
        $region18: #{tpu_custom_call.1} parent=11 // pred_check_branch
          %235 = sbr.rel (%p233) target = $region20
        $region19: #{tpu_custom_call.1} parent=11 // pred_region
          _
        $region20: #{tpu_custom_call.1} parent=11 // pred_fallthru
          _
      $region12: #{tpu_custom_call.1} parent=5 // pred_fallthru
        _
      %p236 = scmp.lt.s32.totalorder %s17, 2
      // Predicated region
      $region21: #{tpu_custom_call.1} parent=5 // pred_check
        %p237 = pneg %p236
      $region22: #{tpu_custom_call.1} parent=5 // pred_check_branch
        %239 = sbr.rel (%p237) target = $region24
      $region23: #{tpu_custom_call.1} parent=5 // pred_region
        // Predicated region
        $region25: #{tpu_custom_call.1} parent=23 // pred_check
          %p240 = pneg %p37
        $region26: #{tpu_custom_call.1} parent=23 // pred_check_branch
          %242 = sbr.rel (%p240) target = $region28
        $region27: #{tpu_custom_call.1} parent=23 // pred_region
          %s243 = smul.u32 16, %s17
          %p244 = scmp.lt.s32.totalorder %s243, 31
          %s245 = scalar_select %p244, %s243, 31
          %s246 = smul.addr %s245, 8
          %s247 = scalar_lea.vmem %s0, %s246
          %s248 = smul.u32 16, %s17
        $region28: #{tpu_custom_call.1} parent=23 // pred_fallthru
          _
        // Predicated region
        $region29: #{tpu_custom_call.1} parent=23 // pred_check
          %p249 = pneg %p105
        $region30: #{tpu_custom_call.1} parent=23 // pred_check_branch
          %251 = sbr.rel (%p249) target = $region32
        $region31: #{tpu_custom_call.1} parent=23 // pred_region
          %s252 = smul.u32 16, %s17
          %p253 = scmp.lt.s32.totalorder %s252, 31
          %s254 = scalar_select %p253, %s252, 31
          %s255 = smul.addr %s254, 8
          %s256 = scalar_lea.vmem %s3, %s255
          %s257 = smul.u32 16, %s17
        $region32: #{tpu_custom_call.1} parent=23 // pred_fallthru
          _
      $region24: #{tpu_custom_call.1} parent=5 // pred_fallthru
        _
      %p258 = scmp.le.s32.totalorder 1, %s17
      %p259 = scmp.lt.s32.totalorder %s17, 3
      %p260 = pnand %p258, %p259
      %p261 = pneg %p260
      // Predicated region
      $region33: #{tpu_custom_call.1} parent=5 // pred_check
        _
      $region34: #{tpu_custom_call.1} parent=5 // pred_check_branch
        %263 = sbr.rel (%p260) target = $region36
      $region35: #{tpu_custom_call.1} parent=5 // pred_region
        %s264 = ssub.s32 %s17, 1
        %s265 = smul.u32 16, %s22
        %p266 = scmp.lt.s32.totalorder %s265, 31
        %s267 = scalar_select %p266, %s265, 31
        %s268 = smul.addr %s267, 8
        %s269 = scalar_lea.vmem %s0, %s268
        %p270 = pneg %p43
        %p271 = pneg %p40
        %p272 = pneg %p64
        %p273 = pneg %p61
        %p274 = pneg %p85
        %p275 = pneg %p82
        %s276 = smul.u32 16, %s22
        %p277 = scmp.lt.s32.totalorder %s276, 31
        %s278 = scalar_select %p277, %s276, 31
        %s279 = smul.addr %s278, 8
        %s280 = scalar_lea.vmem %s3, %s279
        %p281 = pneg %p111
        %p282 = pneg %p108
        %p283 = pneg %p137
        %p284 = pneg %p134
        %s285 = smul.u32 16, %s22
        %p286 = scmp.lt.s32.totalorder %s285, 31
        %s287 = scalar_select %p286, %s285, 31
        %s288 = smul.addr %s287, 8
        %s289 = scalar_lea.vmem %s4, %s288
        %p290 = pneg %p163
        %p291 = pneg %p160
        %s292 = smul.u32 16, %s22
        %p293 = scmp.lt.s32.totalorder %s292, 31
        %s294 = scalar_select %p293, %s292, 31
        %s295 = smul.addr %s294, 8
        %s296 = scalar_lea.vmem %s5, %s295
        %p297 = pneg %p189
        %p298 = pneg %p186
        %s299 = smul.u32 16, %s22
        %p300 = scmp.lt.s32.totalorder %s299, 31
        %s301 = scalar_select %p300, %s299, 31
        %s302 = smul.addr %s301, 8
        %s303 = scalar_lea.vmem %s6, %s302
        %p304 = pneg %p215
        %p305 = pneg %p212
        %s306 = sand.u32 %s202, 1
        %s307 = scalar_lea.sflag [#allocation3], %s306
        %s308 = sand.u32 %s202, 1
        %s309 = scalar_lea.vmem [#allocation2], %s308
        %s310 = smul.u32 16, %s22
        %p311 = scmp.lt.s32.totalorder %s310, 31
        %s312 = scalar_select %p311, %s310, 31
        %s313 = smul.addr %s312, 8
        %s314 = scalar_lea.vmem %s0, %s313
        %s315 = smul.u32 16, %s22
        %s316 = smul.u32 16, %s22
        %p317 = scmp.lt.s32.totalorder %s316, 31
        %s318 = scalar_select %p317, %s316, 31
        %s319 = smul.addr %s318, 8
        %s320 = scalar_lea.vmem %s3, %s319
        %s321 = smul.u32 16, %s22
        %s322 = smul.u32 16, %s22
        %p323 = scmp.lt.s32.totalorder %s322, 31
        %s324 = scalar_select %p323, %s322, 31
        %s325 = smul.addr %s324, 8
        %s326 = scalar_lea.vmem %s4, %s325
        %s327 = smul.u32 16, %s22
        %s328 = smul.u32 16, %s22
        %p329 = scmp.lt.s32.totalorder %s328, 31
        %s330 = scalar_select %p329, %s328, 31
        %s331 = smul.addr %s330, 8
        %s332 = scalar_lea.vmem %s5, %s331
        %s333 = smul.u32 16, %s22
        %s334 = smul.u32 16, %s22
        %p335 = scmp.lt.s32.totalorder %s334, 31
        %s336 = scalar_select %p335, %s334, 31
        %s337 = smul.addr %s336, 8
        %s338 = scalar_lea.vmem %s6, %s337
        %s339 = smul.u32 16, %s22
        %v340 = vld [vmem:[%s314] sm:$0xff]
        %v341 = vld [vmem:[%s314 + $0x8] sm:$0xff]
        %v342 = vld [vmem:[%s314 + $0x10] sm:$0xff]
        %v343 = vld [vmem:[%s314 + $0x18] sm:$0xff]
        %v344 = vld [vmem:[%s314 + $0x20] sm:$0xff]
        %v345 = vld [vmem:[%s314 + $0x28] sm:$0xff]
        %v346 = vld [vmem:[%s314 + $0x30] sm:$0xff]
        %v347 = vld [vmem:[%s314 + $0x38] sm:$0xff]
        %v348 = vld [vmem:[%s314 + $0x40] sm:$0xff]
        %v349 = vld [vmem:[%s314 + $0x48] sm:$0xff]
        %v350 = vld [vmem:[%s314 + $0x50] sm:$0xff]
        %v351 = vld [vmem:[%s314 + $0x58] sm:$0xff]
        %v352 = vld [vmem:[%s314 + $0x60] sm:$0xff]
        %v353 = vld [vmem:[%s314 + $0x68] sm:$0xff]
        %v354 = vld [vmem:[%s314 + $0x70] sm:$0xff]
        %v355 = vld [vmem:[%s314 + $0x78] sm:$0xff]
        %v356 = vld [vmem:[%s1] sm:$0xff]
        %v357 = vld [vmem:[%s1 + $0x8] sm:$0xff]
        %v358 = vld [vmem:[%s1 + $0x10] sm:$0xff]
        %v359 = vld [vmem:[%s1 + $0x18] sm:$0xff]
        %v360 = vld [vmem:[%s2] sm:$0x1]
        %v362 = vlaneseq
        %v363 = vshrl.u32 %v362, 7
        %v364 = vsub.s32 0, %v363
        %v365 = vrot.slane %v360, %v364
        %vm367 = vcmask 261120
        %v369 = vsel %vm367, %v340, 0
        %v372 = vsel %vm367, %v341, 0
        %v375 = vsel %vm367, %v342, 0
        %v378 = vsel %vm367, %v343, 0
        %v381 = vsel %vm367, %v344, 0
        %v384 = vsel %vm367, %v345, 0
        %v387 = vsel %vm367, %v346, 0
        %v390 = vsel %vm367, %v347, 0
        %v393 = vsel %vm367, %v348, 0
        %v396 = vsel %vm367, %v349, 0
        %v399 = vsel %vm367, %v350, 0
        %v402 = vsel %vm367, %v351, 0
        %v405 = vsel %vm367, %v352, 0
        %v408 = vsel %vm367, %v353, 0
        %v411 = vsel %vm367, %v354, 0
        %v414 = vsel %vm367, %v355, 0
        %416 = vmatprep.subr.mxu0 0.0
        %417 = vmatpush1.msra.mxu0 %v356
        %418 = vmatprep.subr.mxu0 0.0
        %419 = vmatpush1.msra.mxu0 %v357
        %420 = vmatprep.subr.mxu0 0.0
        %421 = vmatpush1.msra.mxu0 %v358
        %422 = vmatprep.subr.mxu0 0.0
        %423 = vmatpush1.msra.mxu0 %v359
        %424 = vmatprep.subr.mxu0 0.0
        %425 = vmatpush1.msra.mxu0 0.0
        %426 = vmatprep.subr.mxu0 0.0
        %427 = vmatpush1.msra.mxu0 0.0
        %428 = vmatprep.subr.mxu0 0.0
        %429 = vmatpush1.msra.mxu0 0.0
        %430 = vmatprep.subr.mxu0 0.0
        %431 = vmatpush1.msra.mxu0 0.0
        %432 = vmatprep.subr.mxu0 0.0
        %433 = vmatpush1.msra.mxu0 0.0
        %434 = vmatprep.subr.mxu0 0.0
        %435 = vmatpush1.msra.mxu0 0.0
        %436 = vmatprep.subr.mxu0 0.0
        %437 = vmatpush1.msra.mxu0 0.0
        %438 = vmatprep.subr.mxu0 0.0
        %439 = vmatpush1.msra.mxu0 0.0
        %440 = vmatprep.subr.mxu0 0.0
        %441 = vmatpush1.msra.mxu0 0.0
        %442 = vmatprep.subr.mxu0 0.0
        %443 = vmatpush1.msra.mxu0 0.0
        %444 = vmatprep.subr.mxu0 0.0
        %445 = vmatpush1.msra.mxu0 0.0
        %446 = vmatprep.subr.mxu0 0.0
        %447 = vmatpush1.msra.mxu0 0.0
        %448 = vmatprep.subr.mxu0 0.0
        %449 = vmatpush1.msra.mxu0 0.0
        %450 = vmatprep.subr.mxu0 0.0
        %451 = vmatpush1.msra.mxu0 0.0
        %452 = vmatprep.subr.mxu0 0.0
        %453 = vmatpush1.msra.mxu0 0.0
        %454 = vmatprep.subr.mxu0 0.0
        %455 = vmatpush1.msra.mxu0 0.0
        %456 = vmatprep.subr.mxu0 0.0
        %457 = vmatpush1.msra.mxu0 0.0
        %458 = vmatprep.subr.mxu0 0.0
        %459 = vmatpush1.msra.mxu0 0.0
        %460 = vmatprep.subr.mxu0 0.0
        %461 = vmatpush1.msra.mxu0 0.0
        %462 = vmatprep.subr.mxu0 0.0
        %463 = vmatpush1.msra.mxu0 0.0
        %464 = vmatprep.subr.mxu0 0.0
        %465 = vmatpush1.msra.mxu0 0.0
        %466 = vmatprep.subr.mxu0 0.0
        %467 = vmatpush1.msra.mxu0 0.0
        %468 = vmatprep.subr.mxu0 0.0
        %469 = vmatpush1.msra.mxu0 0.0
        %470 = vmatprep.subr.mxu0 0.0
        %471 = vmatpush1.msra.mxu0 0.0
        %472 = vmatprep.subr.mxu0 0.0
        %473 = vmatpush1.msra.mxu0 0.0
        %474 = vmatprep.subr.mxu0 0.0
        %475 = vmatpush1.msra.mxu0 0.0
        %476 = vmatprep.subr.mxu0 0.0
        %477 = vmatpush1.msra.mxu0 0.0
        %478 = vmatprep.subr.mxu0 0.0
        %479 = vmatpush1.msra.mxu0 0.0
        %480 = vmatprep.mubr.f32.mxu0 0.0
        %481 = vmatmul.mubr.f32.gmra.mrb[0].mxu0 %v369
        %v482 = vpop.f32.mrb[0].mxu0
        %v483 = vadd.f32 %v365, %v482
        %v484 = vpop.f32.mrb[0].mxu0
        %485 = vmatprep.mubr.f32.mxu0 0.0
        %486 = vmatmul.mubr.f32.gmra.mrb[0].mxu0 %v372
        %v487 = vpop.f32.mrb[0].mxu0
        %v488 = vadd.f32 %v365, %v487
        %v489 = vpop.f32.mrb[0].mxu0
        %490 = vmatprep.mubr.f32.mxu0 0.0
        %491 = vmatmul.mubr.f32.gmra.mrb[0].mxu0 %v375
        %v492 = vpop.f32.mrb[0].mxu0
        %v493 = vadd.f32 %v365, %v492
        %v494 = vpop.f32.mrb[0].mxu0
        %495 = vmatprep.mubr.f32.mxu0 0.0
        %496 = vmatmul.mubr.f32.gmra.mrb[0].mxu0 %v378
        %v497 = vpop.f32.mrb[0].mxu0
        %v498 = vadd.f32 %v365, %v497
        %v499 = vpop.f32.mrb[0].mxu0
        %500 = vmatprep.mubr.f32.mxu0 0.0
        %501 = vmatmul.mubr.f32.gmra.mrb[0].mxu0 %v381
        %v502 = vpop.f32.mrb[0].mxu0
        %v503 = vadd.f32 %v365, %v502
        %v504 = vpop.f32.mrb[0].mxu0
        %505 = vmatprep.mubr.f32.mxu0 0.0
        %506 = vmatmul.mubr.f32.gmra.mrb[0].mxu0 %v384
        %v507 = vpop.f32.mrb[0].mxu0
        %v508 = vadd.f32 %v365, %v507
        %v509 = vpop.f32.mrb[0].mxu0
        %510 = vmatprep.mubr.f32.mxu0 0.0
        %511 = vmatmul.mubr.f32.gmra.mrb[0].mxu0 %v387
        %v512 = vpop.f32.mrb[0].mxu0
        %v513 = vadd.f32 %v365, %v512
        %v514 = vpop.f32.mrb[0].mxu0
        %515 = vmatprep.mubr.f32.mxu0 0.0
        %516 = vmatmul.mubr.f32.gmra.mrb[0].mxu0 %v390
        %v517 = vpop.f32.mrb[0].mxu0
        %v518 = vadd.f32 %v365, %v517
        %v519 = vpop.f32.mrb[0].mxu0
        %520 = vmatprep.mubr.f32.mxu0 0.0
        %521 = vmatmul.mubr.f32.gmra.mrb[0].mxu0 %v393
        %v522 = vpop.f32.mrb[0].mxu0
        %v523 = vadd.f32 %v365, %v522
        %v524 = vpop.f32.mrb[0].mxu0
        %525 = vmatprep.mubr.f32.mxu0 0.0
        %526 = vmatmul.mubr.f32.gmra.mrb[0].mxu0 %v396
        %v527 = vpop.f32.mrb[0].mxu0
        %v528 = vadd.f32 %v365, %v527
        %v529 = vpop.f32.mrb[0].mxu0
        %530 = vmatprep.mubr.f32.mxu0 0.0
        %531 = vmatmul.mubr.f32.gmra.mrb[0].mxu0 %v399
        %v532 = vpop.f32.mrb[0].mxu0
        %v533 = vadd.f32 %v365, %v532
        %v534 = vpop.f32.mrb[0].mxu0
        %535 = vmatprep.mubr.f32.mxu0 0.0
        %536 = vmatmul.mubr.f32.gmra.mrb[0].mxu0 %v402
        %v537 = vpop.f32.mrb[0].mxu0
        %v538 = vadd.f32 %v365, %v537
        %v539 = vpop.f32.mrb[0].mxu0
        %540 = vmatprep.mubr.f32.mxu0 0.0
        %541 = vmatmul.mubr.f32.gmra.mrb[0].mxu0 %v405
        %v542 = vpop.f32.mrb[0].mxu0
        %v543 = vadd.f32 %v365, %v542
        %v544 = vpop.f32.mrb[0].mxu0
        %545 = vmatprep.mubr.f32.mxu0 0.0
        %546 = vmatmul.mubr.f32.gmra.mrb[0].mxu0 %v408
        %v547 = vpop.f32.mrb[0].mxu0
        %v548 = vadd.f32 %v365, %v547
        %v549 = vpop.f32.mrb[0].mxu0
        %550 = vmatprep.mubr.f32.mxu0 0.0
        %551 = vmatmul.mubr.f32.gmra.mrb[0].mxu0 %v411
        %v552 = vpop.f32.mrb[0].mxu0
        %v553 = vadd.f32 %v365, %v552
        %v554 = vpop.f32.mrb[0].mxu0
        %555 = vmatprep.mubr.f32.mxu0 0.0
        %556 = vmatmul.mubr.f32.gmra.mrb[0].mxu0 %v414
        %v557 = vpop.f32.mrb[0].mxu0
        %v558 = vadd.f32 %v365, %v557
        %v559 = vpop.f32.mrb[0].mxu0
        %560 = vdwg.mxu0
        %v561 = vld [vmem:[%s320] sm:$0xff]
        %v562 = vld [vmem:[%s320 + $0x8] sm:$0xff]
        %v563 = vld [vmem:[%s320 + $0x10] sm:$0xff]
        %v564 = vld [vmem:[%s320 + $0x18] sm:$0xff]
        %v565 = vld [vmem:[%s320 + $0x20] sm:$0xff]
        %v566 = vld [vmem:[%s320 + $0x28] sm:$0xff]
        %v567 = vld [vmem:[%s320 + $0x30] sm:$0xff]
        %v568 = vld [vmem:[%s320 + $0x38] sm:$0xff]
        %v569 = vld [vmem:[%s320 + $0x40] sm:$0xff]
        %v570 = vld [vmem:[%s320 + $0x48] sm:$0xff]
        %v571 = vld [vmem:[%s320 + $0x50] sm:$0xff]
        %v572 = vld [vmem:[%s320 + $0x58] sm:$0xff]
        %v573 = vld [vmem:[%s320 + $0x60] sm:$0xff]
        %v574 = vld [vmem:[%s320 + $0x68] sm:$0xff]
        %v575 = vld [vmem:[%s320 + $0x70] sm:$0xff]
        %v576 = vld [vmem:[%s320 + $0x78] sm:$0xff]
        %v577 = vmul.f32 %v483, 0.5
        %v578 = vmul.f32 %v488, 0.5
        %v579 = vmul.f32 %v493, 0.5
        %v580 = vmul.f32 %v498, 0.5
        %v581 = vmul.f32 %v503, 0.5
        %v582 = vmul.f32 %v508, 0.5
        %v583 = vmul.f32 %v513, 0.5
        %v584 = vmul.f32 %v518, 0.5
        %v585 = vmul.f32 %v523, 0.5
        %v586 = vmul.f32 %v528, 0.5
        %v587 = vmul.f32 %v533, 0.5
        %v588 = vmul.f32 %v538, 0.5
        %v589 = vmul.f32 %v543, 0.5
        %v590 = vmul.f32 %v548, 0.5
        %v591 = vmul.f32 %v553, 0.5
        %v592 = vmul.f32 %v558, 0.5
        %v593 = vmul.f32 %v577, 1.442695
        %v594 = vpow.pop %v593
        %v595 = vmul.f32 %v578, 1.442695
        %v596 = vpow.pop %v595
        %v597 = vmul.f32 %v579, 1.442695
        %v598 = vpow.pop %v597
        %v599 = vmul.f32 %v580, 1.442695
        %v600 = vpow.pop %v599
        %v601 = vmul.f32 %v581, 1.442695
        %v602 = vpow.pop %v601
        %v603 = vmul.f32 %v582, 1.442695
        %v604 = vpow.pop %v603
        %v605 = vmul.f32 %v583, 1.442695
        %v606 = vpow.pop %v605
        %v607 = vmul.f32 %v584, 1.442695
        %v608 = vpow.pop %v607
        %v609 = vmul.f32 %v585, 1.442695
        %v610 = vpow.pop %v609
        %v611 = vmul.f32 %v586, 1.442695
        %v612 = vpow.pop %v611
        %v613 = vmul.f32 %v587, 1.442695
        %v614 = vpow.pop %v613
        %v615 = vmul.f32 %v588, 1.442695
        %v616 = vpow.pop %v615
        %v617 = vmul.f32 %v589, 1.442695
        %v618 = vpow.pop %v617
        %v619 = vmul.f32 %v590, 1.442695
        %v620 = vpow.pop %v619
        %v621 = vmul.f32 %v591, 1.442695
        %v622 = vpow.pop %v621
        %v623 = vmul.f32 %v592, 1.442695
        %v624 = vpow.pop %v623
        %641 = vrot.lane.b32.xlu0 %v561, 16
        %v642 = vpop.permute.xlu0 %641
        %643 = vrot.lane.b32.xlu0 %v562, 16
        %v644 = vpop.permute.xlu0 %643
        %645 = vrot.lane.b32.xlu0 %v563, 16
        %v646 = vpop.permute.xlu0 %645
        %647 = vrot.lane.b32.xlu0 %v564, 16
        %v648 = vpop.permute.xlu0 %647
        %649 = vrot.lane.b32.xlu0 %v565, 16
        %v650 = vpop.permute.xlu0 %649
        %651 = vrot.lane.b32.xlu0 %v566, 16
        %v652 = vpop.permute.xlu0 %651
        %653 = vrot.lane.b32.xlu0 %v567, 16
        %v654 = vpop.permute.xlu0 %653
        %655 = vrot.lane.b32.xlu0 %v568, 16
        %v656 = vpop.permute.xlu0 %655
        %657 = vrot.lane.b32.xlu0 %v569, 16
        %v658 = vpop.permute.xlu0 %657
        %659 = vrot.lane.b32.xlu0 %v570, 16
        %v660 = vpop.permute.xlu0 %659
        %661 = vrot.lane.b32.xlu0 %v571, 16
        %v662 = vpop.permute.xlu0 %661
        %663 = vrot.lane.b32.xlu0 %v572, 16
        %v664 = vpop.permute.xlu0 %663
        %665 = vrot.lane.b32.xlu0 %v573, 16
        %v666 = vpop.permute.xlu0 %665
        %667 = vrot.lane.b32.xlu0 %v574, 16
        %v668 = vpop.permute.xlu0 %667
        %669 = vrot.lane.b32.xlu0 %v575, 16
        %v670 = vpop.permute.xlu0 %669
        %671 = vrot.lane.b32.xlu0 %v576, 16
        %v672 = vpop.permute.xlu0 %671
        %v689 = vmul.f32 %v594, %v642
        %v690 = vmul.f32 %v596, %v644
        %v691 = vmul.f32 %v598, %v646
        %v692 = vmul.f32 %v600, %v648
        %v693 = vmul.f32 %v602, %v650
        %v694 = vmul.f32 %v604, %v652
        %v695 = vmul.f32 %v606, %v654
        %v696 = vmul.f32 %v608, %v656
        %v697 = vmul.f32 %v610, %v658
        %v698 = vmul.f32 %v612, %v660
        %v699 = vmul.f32 %v614, %v662
        %v700 = vmul.f32 %v616, %v664
        %v701 = vmul.f32 %v618, %v666
        %v702 = vmul.f32 %v620, %v668
        %v703 = vmul.f32 %v622, %v670
        %v704 = vmul.f32 %v624, %v672
        %721 = vrot.lane.b32.xlu0 %v689, 112
        %v722 = vpop.permute.xlu0 %721
        %723 = vrot.lane.b32.xlu0 %v690, 112
        %v724 = vpop.permute.xlu0 %723
        %725 = vrot.lane.b32.xlu0 %v691, 112
        %v726 = vpop.permute.xlu0 %725
        %727 = vrot.lane.b32.xlu0 %v692, 112
        %v728 = vpop.permute.xlu0 %727
        %729 = vrot.lane.b32.xlu0 %v693, 112
        %v730 = vpop.permute.xlu0 %729
        %731 = vrot.lane.b32.xlu0 %v694, 112
        %v732 = vpop.permute.xlu0 %731
        %733 = vrot.lane.b32.xlu0 %v695, 112
        %v734 = vpop.permute.xlu0 %733
        %735 = vrot.lane.b32.xlu0 %v696, 112
        %v736 = vpop.permute.xlu0 %735
        %737 = vrot.lane.b32.xlu0 %v697, 112
        %v738 = vpop.permute.xlu0 %737
        %739 = vrot.lane.b32.xlu0 %v698, 112
        %v740 = vpop.permute.xlu0 %739
        %741 = vrot.lane.b32.xlu0 %v699, 112
        %v742 = vpop.permute.xlu0 %741
        %743 = vrot.lane.b32.xlu0 %v700, 112
        %v744 = vpop.permute.xlu0 %743
        %745 = vrot.lane.b32.xlu0 %v701, 112
        %v746 = vpop.permute.xlu0 %745
        %747 = vrot.lane.b32.xlu0 %v702, 112
        %v748 = vpop.permute.xlu0 %747
        %749 = vrot.lane.b32.xlu0 %v703, 112
        %v750 = vpop.permute.xlu0 %749
        %751 = vrot.lane.b32.xlu0 %v704, 112
        %v752 = vpop.permute.xlu0 %751
        %v769 = vadd.f32 %v483, %v722
        %v770 = vadd.f32 %v488, %v724
        %v771 = vadd.f32 %v493, %v726
        %v772 = vadd.f32 %v498, %v728
        %v773 = vadd.f32 %v503, %v730
        %v774 = vadd.f32 %v508, %v732
        %v775 = vadd.f32 %v513, %v734
        %v776 = vadd.f32 %v518, %v736
        %v777 = vadd.f32 %v523, %v738
        %v778 = vadd.f32 %v528, %v740
        %v779 = vadd.f32 %v533, %v742
        %v780 = vadd.f32 %v538, %v744
        %v781 = vadd.f32 %v543, %v746
        %v782 = vadd.f32 %v548, %v748
        %v783 = vadd.f32 %v553, %v750
        %v784 = vadd.f32 %v558, %v752
        %v785 = vmul.f32 %v769, %v769
        %v786 = vmul.f32 %v770, %v770
        %v787 = vmul.f32 %v771, %v771
        %v788 = vmul.f32 %v772, %v772
        %v789 = vmul.f32 %v773, %v773
        %v790 = vmul.f32 %v774, %v774
        %v791 = vmul.f32 %v775, %v775
        %v792 = vmul.f32 %v776, %v776
        %v793 = vmul.f32 %v777, %v777
        %v794 = vmul.f32 %v778, %v778
        %v795 = vmul.f32 %v779, %v779
        %v796 = vmul.f32 %v780, %v780
        %v797 = vmul.f32 %v781, %v781
        %v798 = vmul.f32 %v782, %v782
        %v799 = vmul.f32 %v783, %v783
        %v800 = vmul.f32 %v784, %v784
        %817 = vrot.lane.b32.xlu0 %v483, 112
        %v818 = vpop.permute.xlu0 %817
        %819 = vrot.lane.b32.xlu0 %v488, 112
        %v820 = vpop.permute.xlu0 %819
        %821 = vrot.lane.b32.xlu0 %v493, 112
        %v822 = vpop.permute.xlu0 %821
        %823 = vrot.lane.b32.xlu0 %v498, 112
        %v824 = vpop.permute.xlu0 %823
        %825 = vrot.lane.b32.xlu0 %v503, 112
        %v826 = vpop.permute.xlu0 %825
        %827 = vrot.lane.b32.xlu0 %v508, 112
        %v828 = vpop.permute.xlu0 %827
        %829 = vrot.lane.b32.xlu0 %v513, 112
        %v830 = vpop.permute.xlu0 %829
        %831 = vrot.lane.b32.xlu0 %v518, 112
        %v832 = vpop.permute.xlu0 %831
        %833 = vrot.lane.b32.xlu0 %v523, 112
        %v834 = vpop.permute.xlu0 %833
        %835 = vrot.lane.b32.xlu0 %v528, 112
        %v836 = vpop.permute.xlu0 %835
        %837 = vrot.lane.b32.xlu0 %v533, 112
        %v838 = vpop.permute.xlu0 %837
        %839 = vrot.lane.b32.xlu0 %v538, 112
        %v840 = vpop.permute.xlu0 %839
        %841 = vrot.lane.b32.xlu0 %v543, 112
        %v842 = vpop.permute.xlu0 %841
        %843 = vrot.lane.b32.xlu0 %v548, 112
        %v844 = vpop.permute.xlu0 %843
        %845 = vrot.lane.b32.xlu0 %v553, 112
        %v846 = vpop.permute.xlu0 %845
        %847 = vrot.lane.b32.xlu0 %v558, 112
        %v848 = vpop.permute.xlu0 %847
        %v865 = vsub.f32 %v785, %v818
        %v866 = vsub.f32 %v786, %v820
        %v867 = vsub.f32 %v787, %v822
        %v868 = vsub.f32 %v788, %v824
        %v869 = vsub.f32 %v789, %v826
        %v870 = vsub.f32 %v790, %v828
        %v871 = vsub.f32 %v791, %v830
        %v872 = vsub.f32 %v792, %v832
        %v873 = vsub.f32 %v793, %v834
        %v874 = vsub.f32 %v794, %v836
        %v875 = vsub.f32 %v795, %v838
        %v876 = vsub.f32 %v796, %v840
        %v877 = vsub.f32 %v797, %v842
        %v878 = vsub.f32 %v798, %v844
        %v879 = vsub.f32 %v799, %v846
        %v880 = vsub.f32 %v800, %v848
        %v881 = vmul.f32 %v561, %v561
        %v882 = vmul.f32 %v562, %v562
        %v883 = vmul.f32 %v563, %v563
        %v884 = vmul.f32 %v564, %v564
        %v885 = vmul.f32 %v565, %v565
        %v886 = vmul.f32 %v566, %v566
        %v887 = vmul.f32 %v567, %v567
        %v888 = vmul.f32 %v568, %v568
        %v889 = vmul.f32 %v569, %v569
        %v890 = vmul.f32 %v570, %v570
        %v891 = vmul.f32 %v571, %v571
        %v892 = vmul.f32 %v572, %v572
        %v893 = vmul.f32 %v573, %v573
        %v894 = vmul.f32 %v574, %v574
        %v895 = vmul.f32 %v575, %v575
        %v896 = vmul.f32 %v576, %v576
        %v897 = vsub.f32 %v865, %v881
        %v898 = vsub.f32 %v866, %v882
        %v899 = vsub.f32 %v867, %v883
        %v900 = vsub.f32 %v868, %v884
        %v901 = vsub.f32 %v869, %v885
        %v902 = vsub.f32 %v870, %v886
        %v903 = vsub.f32 %v871, %v887
        %v904 = vsub.f32 %v872, %v888
        %v905 = vsub.f32 %v873, %v889
        %v906 = vsub.f32 %v874, %v890
        %v907 = vsub.f32 %v875, %v891
        %v908 = vsub.f32 %v876, %v892
        %v909 = vsub.f32 %v877, %v893
        %v910 = vsub.f32 %v878, %v894
        %v911 = vsub.f32 %v879, %v895
        %v912 = vsub.f32 %v880, %v896
        %v913 = vmul.f32 %v897, 0.5
        %v914 = vmul.f32 %v898, 0.5
        %v915 = vmul.f32 %v899, 0.5
        %v916 = vmul.f32 %v900, 0.5
        %v917 = vmul.f32 %v901, 0.5
        %v918 = vmul.f32 %v902, 0.5
        %v919 = vmul.f32 %v903, 0.5
        %v920 = vmul.f32 %v904, 0.5
        %v921 = vmul.f32 %v905, 0.5
        %v922 = vmul.f32 %v906, 0.5
        %v923 = vmul.f32 %v907, 0.5
        %v924 = vmul.f32 %v908, 0.5
        %v925 = vmul.f32 %v909, 0.5
        %v926 = vmul.f32 %v910, 0.5
        %v927 = vmul.f32 %v911, 0.5
        %v928 = vmul.f32 %v912, 0.5
        %vm929 = vcmask 130048
        %v931 = vsel %vm929, 1.0, 0
        %v934 = vsel %vm929, %v913, 0
        %v937 = vsel %vm929, %v914, 0
        %v940 = vsel %vm929, %v915, 0
        %v943 = vsel %vm929, %v916, 0
        %v946 = vsel %vm929, %v917, 0
        %v949 = vsel %vm929, %v918, 0
        %v952 = vsel %vm929, %v919, 0
        %v955 = vsel %vm929, %v920, 0
        %v958 = vsel %vm929, %v921, 0
        %v961 = vsel %vm929, %v922, 0
        %v964 = vsel %vm929, %v923, 0
        %v967 = vsel %vm929, %v924, 0
        %v970 = vsel %vm929, %v925, 0
        %v973 = vsel %vm929, %v926, 0
        %v976 = vsel %vm929, %v927, 0
        %v979 = vsel %vm929, %v928, 0
        %981 = vmatprep.subr.mxu0 0.0
        %982 = vmatpush1.xpose.msra.mxu0 %v934
        %983 = vmatprep.subr.mxu0 0.0
        %984 = vmatpush1.xpose.msra.mxu0 %v937
        %985 = vmatprep.subr.mxu0 0.0
        %986 = vmatpush1.xpose.msra.mxu0 %v940
        %987 = vmatprep.subr.mxu0 0.0
        %988 = vmatpush1.xpose.msra.mxu0 %v943
        %989 = vmatprep.subr.mxu0 0.0
        %990 = vmatpush1.xpose.msra.mxu0 %v946
        %991 = vmatprep.subr.mxu0 0.0
        %992 = vmatpush1.xpose.msra.mxu0 %v949
        %993 = vmatprep.subr.mxu0 0.0
        %994 = vmatpush1.xpose.msra.mxu0 %v952
        %995 = vmatprep.subr.mxu0 0.0
        %996 = vmatpush1.xpose.msra.mxu0 %v955
        %997 = vmatprep.subr.mxu0 0.0
        %998 = vmatpush1.xpose.msra.mxu0 %v958
        %999 = vmatprep.subr.mxu0 0.0
        %1000 = vmatpush1.xpose.msra.mxu0 %v961
        %1001 = vmatprep.subr.mxu0 0.0
        %1002 = vmatpush1.xpose.msra.mxu0 %v964
        %1003 = vmatprep.subr.mxu0 0.0
        %1004 = vmatpush1.xpose.msra.mxu0 %v967
        %1005 = vmatprep.subr.mxu0 0.0
        %1006 = vmatpush1.xpose.msra.mxu0 %v970
        %1007 = vmatprep.subr.mxu0 0.0
        %1008 = vmatpush1.xpose.msra.mxu0 %v973
        %1009 = vmatprep.subr.mxu0 0.0
        %1010 = vmatpush1.xpose.msra.mxu0 %v976
        %1011 = vmatprep.subr.mxu0 0.0
        %1012 = vmatpush1.xpose.msra.mxu0 %v979
        %1013 = vmatprep.subr.mxu0 0.0
        %1014 = vmatpush1.xpose.msra.mxu0 0.0
        %1015 = vmatprep.subr.mxu0 0.0
        %1016 = vmatpush1.xpose.msra.mxu0 0.0
        %1017 = vmatprep.subr.mxu0 0.0
        %1018 = vmatpush1.xpose.msra.mxu0 0.0
        %1019 = vmatprep.subr.mxu0 0.0
        %1020 = vmatpush1.xpose.msra.mxu0 0.0
        %1021 = vmatprep.subr.mxu0 0.0
        %1022 = vmatpush1.xpose.msra.mxu0 0.0
        %1023 = vmatprep.subr.mxu0 0.0
        %1024 = vmatpush1.xpose.msra.mxu0 0.0
        %1025 = vmatprep.subr.mxu0 0.0
        %1026 = vmatpush1.xpose.msra.mxu0 0.0
        %1027 = vmatprep.subr.mxu0 0.0
        %1028 = vmatpush1.xpose.msra.mxu0 0.0
        %1029 = vmatprep.subr.mxu0 0.0
        %1030 = vmatpush1.xpose.msra.mxu0 0.0
        %1031 = vmatprep.subr.mxu0 0.0
        %1032 = vmatpush1.xpose.msra.mxu0 0.0
        %1033 = vmatprep.subr.mxu0 0.0
        %1034 = vmatpush1.xpose.msra.mxu0 0.0
        %1035 = vmatprep.subr.mxu0 0.0
        %1036 = vmatpush1.xpose.msra.mxu0 0.0
        %1037 = vmatprep.subr.mxu0 0.0
        %1038 = vmatpush1.xpose.msra.mxu0 0.0
        %1039 = vmatprep.subr.mxu0 0.0
        %1040 = vmatpush1.xpose.msra.mxu0 0.0
        %1041 = vmatprep.subr.mxu0 0.0
        %1042 = vmatpush1.xpose.msra.mxu0 0.0
        %1043 = vmatprep.subr.mxu0 0.0
        %1044 = vmatpush1.xpose.msra.mxu0 0.0
        %1045 = vmatprep.mubr.f32.mxu0 0.0
        %1046 = vmatmul.mubr.f32.gmra.mrb[0].mxu0 %v931
        %v1047 = vpop.f32.mrb[0].mxu0
        %v1048 = vadd.f32 0.0, %v1047
        %v1049 = vpop.f32.mrb[0].mxu0
        %1050 = vdwg.mxu0
        %1051 = vst.msk [vmem:[%s326] sm:$0xff] %vm929, %v769
        %1052 = vst.msk [vmem:[%s326 + $0x8] sm:$0xff] %vm929, %v770
        %1053 = vst.msk [vmem:[%s326 + $0x10] sm:$0xff] %vm929, %v771
        %1054 = vst.msk [vmem:[%s326 + $0x18] sm:$0xff] %vm929, %v772
        %1055 = vst.msk [vmem:[%s326 + $0x20] sm:$0xff] %vm929, %v773
        %1056 = vst.msk [vmem:[%s326 + $0x28] sm:$0xff] %vm929, %v774
        %1057 = vst.msk [vmem:[%s326 + $0x30] sm:$0xff] %vm929, %v775
        %1058 = vst.msk [vmem:[%s326 + $0x38] sm:$0xff] %vm929, %v776
        %1059 = vst.msk [vmem:[%s326 + $0x40] sm:$0xff] %vm929, %v777
        %1060 = vst.msk [vmem:[%s326 + $0x48] sm:$0xff] %vm929, %v778
        %1061 = vst.msk [vmem:[%s326 + $0x50] sm:$0xff] %vm929, %v779
        %1062 = vst.msk [vmem:[%s326 + $0x58] sm:$0xff] %vm929, %v780
        %1063 = vst.msk [vmem:[%s326 + $0x60] sm:$0xff] %vm929, %v781
        %1064 = vst.msk [vmem:[%s326 + $0x68] sm:$0xff] %vm929, %v782
        %1065 = vst.msk [vmem:[%s326 + $0x70] sm:$0xff] %vm929, %v783
        %1066 = vst.msk [vmem:[%s326 + $0x78] sm:$0xff] %vm929, %v784
        %1067 = vst.msk [vmem:[%s332] sm:$0xff] %vm929, %v483
        %1068 = vst.msk [vmem:[%s332 + $0x8] sm:$0xff] %vm929, %v488
        %1069 = vst.msk [vmem:[%s332 + $0x10] sm:$0xff] %vm929, %v493
        %1070 = vst.msk [vmem:[%s332 + $0x18] sm:$0xff] %vm929, %v498
        %1071 = vst.msk [vmem:[%s332 + $0x20] sm:$0xff] %vm929, %v503
        %1072 = vst.msk [vmem:[%s332 + $0x28] sm:$0xff] %vm929, %v508
        %1073 = vst.msk [vmem:[%s332 + $0x30] sm:$0xff] %vm929, %v513
        %1074 = vst.msk [vmem:[%s332 + $0x38] sm:$0xff] %vm929, %v518
        %1075 = vst.msk [vmem:[%s332 + $0x40] sm:$0xff] %vm929, %v523
        %1076 = vst.msk [vmem:[%s332 + $0x48] sm:$0xff] %vm929, %v528
        %1077 = vst.msk [vmem:[%s332 + $0x50] sm:$0xff] %vm929, %v533
        %1078 = vst.msk [vmem:[%s332 + $0x58] sm:$0xff] %vm929, %v538
        %1079 = vst.msk [vmem:[%s332 + $0x60] sm:$0xff] %vm929, %v543
        %1080 = vst.msk [vmem:[%s332 + $0x68] sm:$0xff] %vm929, %v548
        %1081 = vst.msk [vmem:[%s332 + $0x70] sm:$0xff] %vm929, %v553
        %1082 = vst.msk [vmem:[%s332 + $0x78] sm:$0xff] %vm929, %v558
        %1083 = vst.msk [vmem:[%s338] sm:$0xff] %vm929, %v818
        %1084 = vst.msk [vmem:[%s338 + $0x8] sm:$0xff] %vm929, %v820
        %1085 = vst.msk [vmem:[%s338 + $0x10] sm:$0xff] %vm929, %v822
        %1086 = vst.msk [vmem:[%s338 + $0x18] sm:$0xff] %vm929, %v824
        %1087 = vst.msk [vmem:[%s338 + $0x20] sm:$0xff] %vm929, %v826
        %1088 = vst.msk [vmem:[%s338 + $0x28] sm:$0xff] %vm929, %v828
        %1089 = vst.msk [vmem:[%s338 + $0x30] sm:$0xff] %vm929, %v830
        %1090 = vst.msk [vmem:[%s338 + $0x38] sm:$0xff] %vm929, %v832
        %1091 = vst.msk [vmem:[%s338 + $0x40] sm:$0xff] %vm929, %v834
        %1092 = vst.msk [vmem:[%s338 + $0x48] sm:$0xff] %vm929, %v836
        %1093 = vst.msk [vmem:[%s338 + $0x50] sm:$0xff] %vm929, %v838
        %1094 = vst.msk [vmem:[%s338 + $0x58] sm:$0xff] %vm929, %v840
        %1095 = vst.msk [vmem:[%s338 + $0x60] sm:$0xff] %vm929, %v842
        %1096 = vst.msk [vmem:[%s338 + $0x68] sm:$0xff] %vm929, %v844
        %1097 = vst.msk [vmem:[%s338 + $0x70] sm:$0xff] %vm929, %v846
        %1098 = vst.msk [vmem:[%s338 + $0x78] sm:$0xff] %vm929, %v848
        %1099 = vst [vmem:[%s309] sm:$0x1] %v1048
        %s1100 = smul.u32 16, %s22
        %p1101 = scmp.lt.s32.totalorder %s1100, 31
        %s1102 = scalar_select %p1101, %s1100, 31
        %s1103 = smul.addr %s1102, 8
        %s1104 = scalar_lea.vmem %s4, %s1103
        %s1105 = smul.u32 16, %s22
        %p1106 = scmp.lt.s32.totalorder %s1105, 31
        %s1107 = scalar_select %p1106, %s1105, 31
        %s1108 = smul.addr %s1107, 8
        %s1109 = scalar_lea.vmem %s5, %s1108
        %s1110 = smul.u32 16, %s22
        %p1111 = scmp.lt.s32.totalorder %s1110, 31
        %s1112 = scalar_select %p1111, %s1110, 31
        %s1113 = smul.addr %s1112, 8
        %s1114 = scalar_lea.vmem %s6, %s1113
        %s1115 = sand.u32 %s202, 1
        %s1116 = scalar_lea.sflag [#allocation3], %s1115
        %s1117 = sand.u32 %s202, 1
        %s1118 = scalar_lea.vmem [#allocation2], %s1117
        // Predicated region
        $region37: #{tpu_custom_call.1} parent=35 // pred_check
          %p1119 = pneg %p134
        $region38: #{tpu_custom_call.1} parent=35 // pred_check_branch
          %1121 = sbr.rel (%p1119) target = $region40
        $region39: #{tpu_custom_call.1} parent=35 // pred_region
          %s1122 = smul.u32 16, %s22
        $region40: #{tpu_custom_call.1} parent=35 // pred_fallthru
          _
        // Predicated region
        $region41: #{tpu_custom_call.1} parent=35 // pred_check
          %p1123 = pneg %p160
        $region42: #{tpu_custom_call.1} parent=35 // pred_check_branch
          %1125 = sbr.rel (%p1123) target = $region44
        $region43: #{tpu_custom_call.1} parent=35 // pred_region
          %s1126 = smul.u32 16, %s22
        $region44: #{tpu_custom_call.1} parent=35 // pred_fallthru
          _
        // Predicated region
        $region45: #{tpu_custom_call.1} parent=35 // pred_check
          %p1127 = pneg %p186
        $region46: #{tpu_custom_call.1} parent=35 // pred_check_branch
          %1129 = sbr.rel (%p1127) target = $region48
        $region47: #{tpu_custom_call.1} parent=35 // pred_region
          %s1130 = smul.u32 16, %s22
        $region48: #{tpu_custom_call.1} parent=35 // pred_fallthru
          _
        // Predicated region
        $region49: #{tpu_custom_call.1} parent=35 // pred_check
          %p1131 = pneg %p212
        $region50: #{tpu_custom_call.1} parent=35 // pred_check_branch
          %1133 = sbr.rel (%p1131) target = $region52
        $region51: #{tpu_custom_call.1} parent=35 // pred_region
          %s1135 = ssub.s32 16, 16
          %1136 = vsyncadd %s1116, %s1135
          %s1137 = smul.addr %s22, 16
          %s1138 = scalar_lea.hbm %s7, %s1137
          %s1140 = sshll.u32 %s1118, 4
          %s1141 = int_to_ptr.vmem [resolvable:$true] %s1140
          %1143 = dma.vmem_to_hbm [thread:$0]  %s1141, 16, %s1138, %s1116
        $region52: #{tpu_custom_call.1} parent=35 // pred_fallthru
          _
      $region36: #{tpu_custom_call.1} parent=5 // pred_fallthru
        _
      %p1144 = scmp.le.s32.totalorder 2, %s17
      // Predicated region
      $region53: #{tpu_custom_call.1} parent=5 // pred_check
        %p1145 = pneg %p1144
      $region54: #{tpu_custom_call.1} parent=5 // pred_check_branch
        %1147 = sbr.rel (%p1145) target = $region56
      $region55: #{tpu_custom_call.1} parent=5 // pred_region
        %s1148 = ssub.s32 %s17, 2
        // Predicated region
        $region57: #{tpu_custom_call.1} parent=55 // pred_check
          %p1149 = pneg %p140
        $region58: #{tpu_custom_call.1} parent=55 // pred_check_branch
          %1151 = sbr.rel (%p1149) target = $region60
        $region59: #{tpu_custom_call.1} parent=55 // pred_region
          %s1152 = smul.u32 16, %s23
          %p1153 = scmp.lt.s32.totalorder %s1152, 31
          %s1154 = scalar_select %p1153, %s1152, 31
          %s1155 = smul.addr %s1154, 8
          %s1156 = scalar_lea.vmem %s4, %s1155
        $region60: #{tpu_custom_call.1} parent=55 // pred_fallthru
          _
        // Predicated region
        $region61: #{tpu_custom_call.1} parent=55 // pred_check
          %p1157 = pneg %p166
        $region62: #{tpu_custom_call.1} parent=55 // pred_check_branch
          %1159 = sbr.rel (%p1157) target = $region64
        $region63: #{tpu_custom_call.1} parent=55 // pred_region
          %s1160 = smul.u32 16, %s23
          %p1161 = scmp.lt.s32.totalorder %s1160, 31
          %s1162 = scalar_select %p1161, %s1160, 31
          %s1163 = smul.addr %s1162, 8
          %s1164 = scalar_lea.vmem %s5, %s1163
        $region64: #{tpu_custom_call.1} parent=55 // pred_fallthru
          _
        // Predicated region
        $region65: #{tpu_custom_call.1} parent=55 // pred_check
          %p1165 = pneg %p192
        $region66: #{tpu_custom_call.1} parent=55 // pred_check_branch
          %1167 = sbr.rel (%p1165) target = $region68
        $region67: #{tpu_custom_call.1} parent=55 // pred_region
          %s1168 = smul.u32 16, %s23
          %p1169 = scmp.lt.s32.totalorder %s1168, 31
          %s1170 = scalar_select %p1169, %s1168, 31
          %s1171 = smul.addr %s1170, 8
          %s1172 = scalar_lea.vmem %s6, %s1171
        $region68: #{tpu_custom_call.1} parent=55 // pred_fallthru
          _
        // Predicated region
        $region69: #{tpu_custom_call.1} parent=55 // pred_check
          %p1173 = pneg %p218
        $region70: #{tpu_custom_call.1} parent=55 // pred_check_branch
          %1175 = sbr.rel (%p1173) target = $region72
        $region71: #{tpu_custom_call.1} parent=55 // pred_region
          %s1176 = sand.u32 %s203, 1
          %s1177 = scalar_lea.sflag [#allocation3], %s1176
          %s1178 = sand.u32 %s203, 1
          %s1179 = scalar_lea.vmem [#allocation2], %s1178
          %1180 = dma.done %s1177, 16
        $region72: #{tpu_custom_call.1} parent=55 // pred_fallthru
          _
      $region56: #{tpu_custom_call.1} parent=5 // pred_fallthru
        _
    $region6: #{tpu_custom_call.1} parent=1 // loop_footer
      %s21 = sadd.s32 1, %s17
    $region7: #{tpu_custom_call.1} parent=1 // loop_footer_branch
      %16 = sbr.rel target = $region3
    $region8: #{tpu_custom_call.1} parent=1 // loop_exit
      _
    %1181 = vsyncpa [#allocation3], 1
    %s1182 = scalar_lea.sflag [#allocation3], 1
    %1183 = vsyncpa %s1182, 1

</llo_original>
